<compile_context>
chip_gen: v7x
topology: tpu7x:2x2x1
jax: 0.10.0
libtpu: 0.0.40
codegen_flags: <defaults>
</compile_context>

<pallas_src>
import functools

import jax
import jax.numpy as jnp
from jax.experimental import pallas as pl
from jax.experimental.pallas import tpu as pltpu

IN_FEATURES = 48 * 4 * 4   # 768
HIDDEN = 100
OUT_FEATURES = 2
H_PAD = 128                # hidden dim padded to one full lane tile
O_PAD = 128                # output dim padded so stores are unmasked
BN_EPS = 1e-5


def _domain_classifier_kernel(x_ref, w1_ref, gamma_ref, beta_ref, w2_ref, b2_ref,
                              o_ref, sum_ref, ssq_ref, scale_ref, shift_ref,
                              *, inv_batch):
    p = pl.program_id(0)   # 0: batch-stats pass, 1: normalize + project pass
    i = pl.program_id(1)   # batch tile index

    # GradReverse.forward is the identity (the constant only scales gradients),
    # so forward compute starts directly from x.
    # Linear-1 bias is intentionally omitted: BatchNorm's mean subtraction
    # cancels it exactly, so adding it would be dead VPU work + an extra DMA.
    h = jnp.dot(x_ref[...], w1_ref[...], preferred_element_type=jnp.float32)

    @pl.when(p == 0)
    def _accumulate_stats():
        @pl.when(i == 0)
        def _init():
            sum_ref[...] = jnp.zeros_like(sum_ref)
            ssq_ref[...] = jnp.zeros_like(ssq_ref)

        sum_ref[...] += jnp.sum(h, axis=0, keepdims=True)
        ssq_ref[...] += jnp.sum(h * h, axis=0, keepdims=True)

    @pl.when(p == 1)
    def _normalize_and_project():
        @pl.when(i == 0)
        def _fold_bn():
            # Fold BatchNorm into a single per-feature scale/shift, computed once.
            mean = sum_ref[...] * inv_batch
            var = ssq_ref[...] * inv_batch - mean * mean
            scale = gamma_ref[...] * jax.lax.rsqrt(var + BN_EPS)
            scale_ref[...] = scale
            shift_ref[...] = beta_ref[...] - mean * scale

        hn = jnp.maximum(h * scale_ref[...] + shift_ref[...], 0.0)   # BN-FMA + ReLU
        o_ref[...] = (
            jnp.dot(hn, w2_ref[...], preferred_element_type=jnp.float32)
            + b2_ref[...]
        )


def _pick_batch_tile(B):
    # Largest sublane-aligned tile that divides B, capped at 512 rows so the
    # double-buffered x tile (~3 MiB) stays well inside v7x's 64 MiB VMEM.
    for tb in (512, 256, 128, 64, 32, 16, 8):
        if B % tb == 0:
            return tb
    return B  # tiny / odd batch: single whole-batch block


def domain_classifier(x, constant, params, *, batch_tile=None):
    # `constant` only affects the backward pass of GradReverse; forward ignores it.
    del constant
    w1, b1, gamma, beta, w2, b2 = params
    del b1  # exactly cancelled by the BatchNorm mean subtraction

    B = x.shape[0]
    tb = batch_tile if batch_tile is not None else _pick_batch_tile(B)
    assert B % tb == 0, "batch tile must divide the batch (BN stats are exact)"
    nb = B // tb

    # Pad parameters to lane-aligned shapes (zero padding keeps padded lanes at
    # exactly 0 through BN/ReLU/matmul: gamma_pad = 0 -> scale = 0, shift = 0).
    w1_p = jnp.pad(w1, ((0, 0), (0, H_PAD - HIDDEN)))
    gamma_p = jnp.pad(gamma.reshape(1, -1), ((0, 0), (0, H_PAD - HIDDEN)))
    beta_p = jnp.pad(beta.reshape(1, -1), ((0, 0), (0, H_PAD - HIDDEN)))
    w2_p = jnp.pad(w2, ((0, H_PAD - HIDDEN), (0, O_PAD - OUT_FEATURES)))
    b2_p = jnp.pad(b2.reshape(1, -1), ((0, 0), (0, O_PAD - OUT_FEATURES)))

    # Output index map: pass 0 never writes, so park it on block 0 (p*i == 0)
    # to avoid garbage write-backs; pass 1 fully writes block i before it is
    # flushed, so every HBM write carries valid data.
    out_spec = pl.BlockSpec((tb, O_PAD), lambda p, i: (p * i, 0))

    grid_spec = pltpu.PrefetchScalarGridSpec(
        num_scalar_prefetch=0,
        grid=(2, nb),
        in_specs=[
            pl.BlockSpec((tb, IN_FEATURES), lambda p, i: (i, 0)),   # x tile
            pl.BlockSpec((IN_FEATURES, H_PAD), lambda p, i: (0, 0)),  # w1 (resident)
            pl.BlockSpec((1, H_PAD), lambda p, i: (0, 0)),          # gamma
            pl.BlockSpec((1, H_PAD), lambda p, i: (0, 0)),          # beta
            pl.BlockSpec((H_PAD, O_PAD), lambda p, i: (0, 0)),      # w2
            pl.BlockSpec((1, O_PAD), lambda p, i: (0, 0)),          # b2
        ],
        out_specs=out_spec,
        scratch_shapes=[
            pltpu.VMEM((1, H_PAD), jnp.float32),  # per-feature sum
            pltpu.VMEM((1, H_PAD), jnp.float32),  # per-feature sum of squares
            pltpu.VMEM((1, H_PAD), jnp.float32),  # folded BN scale
            pltpu.VMEM((1, H_PAD), jnp.float32),  # folded BN shift
        ],
    )

    # Right-sized VMEM budget: double-buffered x / out tiles + resident weights
    # + generous slack. ~12 MiB at tb=512, far under v7x's 64 MiB physical VMEM.
    vmem_limit = int(
        2 * tb * IN_FEATURES * 4        # x tile, double-buffered
        + 2 * tb * O_PAD * 4            # padded output tile, double-buffered
        + 2 * (IN_FEATURES + O_PAD) * H_PAD * 4   # w1 + w2 buffers
        + (8 << 20)                     # small operands, scratch, temporaries
    )

    kernel = functools.partial(_domain_classifier_kernel, inv_batch=1.0 / B)

    out_padded = pl.pallas_call(
        kernel,
        out_shape=jax.ShapeDtypeStruct((B, O_PAD), jnp.float32),
        grid_spec=grid_spec,
        compiler_params=pltpu.CompilerParams(
            # Both axes carry the shared BN-stats scratch -> sequential.
            dimension_semantics=("arbitrary", "arbitrary"),
            vmem_limit_bytes=vmem_limit,
        ),
    )(x, w1_p, gamma_p, beta_p, w2_p, b2_p)

    return out_padded[:, :OUT_FEATURES]


def init_params(key):
    k1, k2, k3, k4 = jax.random.split(key, 4)
    bound1 = 1.0 / (IN_FEATURES ** 0.5)
    w1 = jax.random.uniform(k1, (IN_FEATURES, HIDDEN), jnp.float32, -bound1, bound1)
    b1 = jax.random.uniform(k2, (1, HIDDEN), jnp.float32, -bound1, bound1)
    gamma = jnp.ones((1, HIDDEN), jnp.float32)   # BatchNorm1d default weight
    beta = jnp.zeros((1, HIDDEN), jnp.float32)   # BatchNorm1d default bias
    bound2 = 1.0 / (HIDDEN ** 0.5)
    w2 = jax.random.uniform(k3, (HIDDEN, OUT_FEATURES), jnp.float32, -bound2, bound2)
    b2 = jax.random.uniform(k4, (1, OUT_FEATURES), jnp.float32, -bound2, bound2)
    return (w1, b1, gamma, beta, w2, b2)


def reference(x, params):
    # Pure-JAX reference matching the PyTorch training-mode forward (keeps b1,
    # which the kernel drops — BN mean subtraction cancels it exactly).
    w1, b1, gamma, beta, w2, b2 = params
    h = x @ w1 + b1
    mean = jnp.mean(h, axis=0, keepdims=True)
    var = jnp.mean((h - mean) ** 2, axis=0, keepdims=True)
    h = (h - mean) / jnp.sqrt(var + BN_EPS) * gamma + beta
    h = jnp.maximum(h, 0.0)
    return h @ w2 + b2


# TODO(synk): GradReverse's custom backward (negate * constant) and BatchNorm's
# running_mean/running_var updates are training side effects outside this
# forward kernel.

if __name__ == "__main__":
    key = jax.random.PRNGKey(0)
    kx1, kx2, kp = jax.random.split(key, 3)
    params = init_params(kp)
    constant = jnp.float32(0.5)  # grad-reverse scale; unused in forward

    # Case 1: small batch, single batch tile (grid = (2, 1)).
    B1 = 8
    x1 = jax.random.normal(kx1, (B1, IN_FEATURES), jnp.float32)
    out1 = jax.block_until_ready(domain_classifier(x1, constant, params))
    ref1 = reference(x1, params)
    assert out1.shape == (B1, OUT_FEATURES)
    assert jnp.allclose(out1, ref1, atol=1e-4, rtol=1e-4)

    # Case 2: multi-tile batch exercising the two-pass BN pipeline (grid = (2, 4)).
    B2 = 64
    x2 = jax.random.normal(kx2, (B2, IN_FEATURES), jnp.float32)
    out2 = jax.block_until_ready(
        domain_classifier(x2, constant, params, batch_tile=16))
    ref2 = reference(x2, params)
    assert out2.shape == (B2, OUT_FEATURES)
    assert jnp.allclose(out2, ref2, atol=1e-4, rtol=1e-4)

    print("KERNEL_OK")
</pallas_src>

<mosaic_0001>
module attributes {stable_mosaic.version = 11 : i64} {
  func.func @_domain_classifier_kernel(%arg0: i32, %arg1: i32, %arg2: memref<8x768xf32, #tpu.memory_space<vmem>>, %arg3: memref<768x128xf32, #tpu.memory_space<vmem>>, %arg4: memref<1x128xf32, #tpu.memory_space<vmem>>, %arg5: memref<1x128xf32, #tpu.memory_space<vmem>>, %arg6: memref<128x128xf32, #tpu.memory_space<vmem>>, %arg7: memref<1x128xf32, #tpu.memory_space<vmem>>, %arg8: memref<8x128xf32, #tpu.memory_space<vmem>>, %arg9: memref<1x128xf32, #tpu.memory_space<vmem>>, %arg10: memref<1x128xf32, #tpu.memory_space<vmem>>, %arg11: memref<1x128xf32, #tpu.memory_space<vmem>>, %arg12: memref<1x128xf32, #tpu.memory_space<vmem>>) attributes {dimension_semantics = [#tpu.dimension_semantics<arbitrary>, #tpu.dimension_semantics<arbitrary>], iteration_bounds = array<i64: 2, 1>, scalar_prefetch = 0 : i64, scratch_operands = 4 : i64, tpu.core_type = #tpu.core_type<tc>, window_params = [{transform_indices = @transform_0, window_bounds = array<i64: 8, 768>}, {pipeline_mode = #tpu.pipeline_mode<synchronous>, transform_indices = @transform_1, window_bounds = array<i64: 768, 128>}, {pipeline_mode = #tpu.pipeline_mode<synchronous>, transform_indices = @transform_2, window_bounds = array<i64: 1, 128>}, {pipeline_mode = #tpu.pipeline_mode<synchronous>, transform_indices = @transform_3, window_bounds = array<i64: 1, 128>}, {pipeline_mode = #tpu.pipeline_mode<synchronous>, transform_indices = @transform_4, window_bounds = array<i64: 128, 128>}, {pipeline_mode = #tpu.pipeline_mode<synchronous>, transform_indices = @transform_5, window_bounds = array<i64: 1, 128>}, {transform_indices = @transform_6, window_bounds = array<i64: 8, 128>}]} {
    %c0 = arith.constant 0 : index
    %c0_0 = arith.constant 0 : index
    %0 = vector.load %arg2[%c0, %c0_0] : memref<8x768xf32, #tpu.memory_space<vmem>>, vector<8x768xf32>
    %c0_1 = arith.constant 0 : index
    %c0_2 = arith.constant 0 : index
    %1 = vector.load %arg3[%c0_1, %c0_2] : memref<768x128xf32, #tpu.memory_space<vmem>>, vector<768x128xf32>
    %cst = arith.constant dense<0.000000e+00> : vector<8x128xf32>
    %2 = tpu.matmul %0, %1, %cst {dimension_numbers = #tpu.dot_dimension_numbers<[1], [0], [0], [1], [0, 0, 1, 1], [], []>} : vector<8x768xf32>, vector<768x128xf32>, vector<8x128xf32> -> vector<8x128xf32>
    %c0_i32 = arith.constant 0 : i32
    %3 = arith.cmpi eq, %arg0, %c0_i32 : i32
    %4 = arith.extui %3 : i1 to i32
    %c0_i32_3 = arith.constant 0 : i32
    %5 = arith.cmpi ne, %4, %c0_i32_3 : i32
    scf.if %5 {
      %c0_i32_5 = arith.constant 0 : i32
      %9 = arith.cmpi eq, %arg1, %c0_i32_5 : i32
      %10 = arith.extui %9 : i1 to i32
      %c0_i32_6 = arith.constant 0 : i32
      %11 = arith.cmpi ne, %10, %c0_i32_6 : i32
      scf.if %11 {
        %cst_17 = arith.constant 0.000000e+00 : f32
        %23 = vector.broadcast %cst_17 : f32 to vector<1x128xf32>
        %c0_18 = arith.constant 0 : index
        %c0_19 = arith.constant 0 : index
        %24 = vector.load %arg9[%c0_18, %c0_19] : memref<1x128xf32, #tpu.memory_space<vmem>>, vector<1x128xf32>
        tpu.vector_store %arg9[%c0_18, %c0_19], %23 {strides = array<i32>} : memref<1x128xf32, #tpu.memory_space<vmem>>, vector<1x128xf32>,
        %cst_20 = arith.constant 0.000000e+00 : f32
        %25 = vector.broadcast %cst_20 : f32 to vector<1x128xf32>
        %c0_21 = arith.constant 0 : index
        %c0_22 = arith.constant 0 : index
        %26 = vector.load %arg10[%c0_21, %c0_22] : memref<1x128xf32, #tpu.memory_space<vmem>>, vector<1x128xf32>
        tpu.vector_store %arg10[%c0_21, %c0_22], %25 {strides = array<i32>} : memref<1x128xf32, #tpu.memory_space<vmem>>, vector<1x128xf32>,
      } else {
      }
      %c0_7 = arith.constant 0 : index
      %c0_8 = arith.constant 0 : index
      %12 = vector.load %arg9[%c0_7, %c0_8] : memref<1x128xf32, #tpu.memory_space<vmem>>, vector<1x128xf32>
      %cst_9 = arith.constant dense<0.000000e+00> : vector<128xf32>
      %13 = vector.multi_reduction <add>, %2, %cst_9 [0] : vector<8x128xf32> to vector<128xf32>
      %14 = vector.shape_cast %13 : vector<128xf32> to vector<1x128xf32>
      %15 = arith.addf %12, %14 : vector<1x128xf32>
      %c0_10 = arith.constant 0 : index
      %c0_11 = arith.constant 0 : index
      %16 = vector.load %arg9[%c0_10, %c0_11] : memref<1x128xf32, #tpu.memory_space<vmem>>, vector<1x128xf32>
      tpu.vector_store %arg9[%c0_10, %c0_11], %15 {strides = array<i32>} : memref<1x128xf32, #tpu.memory_space<vmem>>, vector<1x128xf32>,
      %c0_12 = arith.constant 0 : index
      %c0_13 = arith.constant 0 : index
      %17 = vector.load %arg10[%c0_12, %c0_13] : memref<1x128xf32, #tpu.memory_space<vmem>>, vector<1x128xf32>
      %18 = arith.mulf %2, %2 : vector<8x128xf32>
      %cst_14 = arith.constant dense<0.000000e+00> : vector<128xf32>
      %19 = vector.multi_reduction <add>, %18, %cst_14 [0] : vector<8x128xf32> to vector<128xf32>
      %20 = vector.shape_cast %19 : vector<128xf32> to vector<1x128xf32>
      %21 = arith.addf %17, %20 : vector<1x128xf32>
      %c0_15 = arith.constant 0 : index
      %c0_16 = arith.constant 0 : index
      %22 = vector.load %arg10[%c0_15, %c0_16] : memref<1x128xf32, #tpu.memory_space<vmem>>, vector<1x128xf32>
      tpu.vector_store %arg10[%c0_15, %c0_16], %21 {strides = array<i32>} : memref<1x128xf32, #tpu.memory_space<vmem>>, vector<1x128xf32>,
    } else {
    }
    %c1_i32 = arith.constant 1 : i32
    %6 = arith.cmpi eq, %arg0, %c1_i32 : i32
    %7 = arith.extui %6 : i1 to i32
    %c0_i32_4 = arith.constant 0 : i32
    %8 = arith.cmpi ne, %7, %c0_i32_4 : i32
    scf.if %8 {
      %c0_i32_5 = arith.constant 0 : i32
      %9 = arith.cmpi eq, %arg1, %c0_i32_5 : i32
      %10 = arith.extui %9 : i1 to i32
      %c0_i32_6 = arith.constant 0 : i32
      %11 = arith.cmpi ne, %10, %c0_i32_6 : i32
      scf.if %11 {
        %c0_19 = arith.constant 0 : index
        %c0_20 = arith.constant 0 : index
        %26 = vector.load %arg9[%c0_19, %c0_20] : memref<1x128xf32, #tpu.memory_space<vmem>>, vector<1x128xf32>
        %cst_21 = arith.constant 1.250000e-01 : f32
        %27 = vector.broadcast %cst_21 : f32 to vector<1x128xf32>
        %28 = arith.mulf %26, %27 : vector<1x128xf32>
        %c0_22 = arith.constant 0 : index
        %c0_23 = arith.constant 0 : index
        %29 = vector.load %arg10[%c0_22, %c0_23] : memref<1x128xf32, #tpu.memory_space<vmem>>, vector<1x128xf32>
        %cst_24 = arith.constant 1.250000e-01 : f32
        %30 = vector.broadcast %cst_24 : f32 to vector<1x128xf32>
        %31 = arith.mulf %29, %30 : vector<1x128xf32>
        %32 = arith.mulf %28, %28 : vector<1x128xf32>
        %33 = arith.subf %31, %32 : vector<1x128xf32>
        %c0_25 = arith.constant 0 : index
        %c0_26 = arith.constant 0 : index
        %34 = vector.load %arg4[%c0_25, %c0_26] : memref<1x128xf32, #tpu.memory_space<vmem>>, vector<1x128xf32>
        %cst_27 = arith.constant 9.99999974E-6 : f32
        %35 = vector.broadcast %cst_27 : f32 to vector<1x128xf32>
        %36 = arith.addf %33, %35 : vector<1x128xf32>
        %37 = math.rsqrt %36 : vector<1x128xf32>
        %38 = arith.mulf %34, %37 : vector<1x128xf32>
        %c0_28 = arith.constant 0 : index
        %c0_29 = arith.constant 0 : index
        %39 = vector.load %arg11[%c0_28, %c0_29] : memref<1x128xf32, #tpu.memory_space<vmem>>, vector<1x128xf32>
        tpu.vector_store %arg11[%c0_28, %c0_29], %38 {strides = array<i32>} : memref<1x128xf32, #tpu.memory_space<vmem>>, vector<1x128xf32>,
        %c0_30 = arith.constant 0 : index
        %c0_31 = arith.constant 0 : index
        %40 = vector.load %arg5[%c0_30, %c0_31] : memref<1x128xf32, #tpu.memory_space<vmem>>, vector<1x128xf32>
        %41 = arith.mulf %28, %38 : vector<1x128xf32>
        %42 = arith.subf %40, %41 : vector<1x128xf32>
        %c0_32 = arith.constant 0 : index
        %c0_33 = arith.constant 0 : index
        %43 = vector.load %arg12[%c0_32, %c0_33] : memref<1x128xf32, #tpu.memory_space<vmem>>, vector<1x128xf32>
        tpu.vector_store %arg12[%c0_32, %c0_33], %42 {strides = array<i32>} : memref<1x128xf32, #tpu.memory_space<vmem>>, vector<1x128xf32>,
      } else {
      }
      %c0_7 = arith.constant 0 : index
      %c0_8 = arith.constant 0 : index
      %12 = vector.load %arg11[%c0_7, %c0_8] : memref<1x128xf32, #tpu.memory_space<vmem>>, vector<1x128xf32>
      %13 = vector.broadcast %12 : vector<1x128xf32> to vector<8x128xf32>
      %14 = arith.mulf %2, %13 : vector<8x128xf32>
      %c0_9 = arith.constant 0 : index
      %c0_10 = arith.constant 0 : index
      %15 = vector.load %arg12[%c0_9, %c0_10] : memref<1x128xf32, #tpu.memory_space<vmem>>, vector<1x128xf32>
      %16 = vector.broadcast %15 : vector<1x128xf32> to vector<8x128xf32>
      %17 = arith.addf %14, %16 : vector<8x128xf32>
      %cst_11 = arith.constant 0.000000e+00 : f32
      %18 = vector.broadcast %cst_11 : f32 to vector<8x128xf32>
      %19 = arith.maximumf %17, %18 : vector<8x128xf32>
      %c0_12 = arith.constant 0 : index
      %c0_13 = arith.constant 0 : index
      %20 = vector.load %arg6[%c0_12, %c0_13] : memref<128x128xf32, #tpu.memory_space<vmem>>, vector<128x128xf32>
      %cst_14 = arith.constant dense<0.000000e+00> : vector<8x128xf32>
      %21 = tpu.matmul %19, %20, %cst_14 {dimension_numbers = #tpu.dot_dimension_numbers<[1], [0], [0], [1], [0, 0, 1, 1], [], []>} : vector<8x128xf32>, vector<128x128xf32>, vector<8x128xf32> -> vector<8x128xf32>
      %c0_15 = arith.constant 0 : index
      %c0_16 = arith.constant 0 : index
      %22 = vector.load %arg7[%c0_15, %c0_16] : memref<1x128xf32, #tpu.memory_space<vmem>>, vector<1x128xf32>
      %23 = vector.broadcast %22 : vector<1x128xf32> to vector<8x128xf32>
      %24 = arith.addf %21, %23 : vector<8x128xf32>
      %c0_17 = arith.constant 0 : index
      %c0_18 = arith.constant 0 : index
      %25 = vector.load %arg8[%c0_17, %c0_18] : memref<8x128xf32, #tpu.memory_space<vmem>>, vector<8x128xf32>
      tpu.vector_store %arg8[%c0_17, %c0_18], %24 {strides = array<i32>} : memref<8x128xf32, #tpu.memory_space<vmem>>, vector<8x128xf32>,
    } else {
    }
    return
  }
  func.func @transform_0(%arg0: i32, %arg1: i32) -> (i32, i32) {
    %c0_i32 = arith.constant 0 : i32
    %c0_i32_0 = arith.constant 0 : i32
    return %arg1, %c0_i32 : i32, i32
  }
  func.func @transform_1(%arg0: i32, %arg1: i32) -> (i32, i32) {
    %c0_i32 = arith.constant 0 : i32
    %c0_i32_0 = arith.constant 0 : i32
    %c0_i32_1 = arith.constant 0 : i32
    return %c0_i32, %c0_i32_0 : i32, i32
  }
  func.func @transform_2(%arg0: i32, %arg1: i32) -> (i32, i32) {
    %c0_i32 = arith.constant 0 : i32
    %c0_i32_0 = arith.constant 0 : i32
    %c0_i32_1 = arith.constant 0 : i32
    return %c0_i32, %c0_i32_0 : i32, i32
  }
  func.func @transform_3(%arg0: i32, %arg1: i32) -> (i32, i32) {
    %c0_i32 = arith.constant 0 : i32
    %c0_i32_0 = arith.constant 0 : i32
    %c0_i32_1 = arith.constant 0 : i32
    return %c0_i32, %c0_i32_0 : i32, i32
  }
  func.func @transform_4(%arg0: i32, %arg1: i32) -> (i32, i32) {
    %c0_i32 = arith.constant 0 : i32
    %c0_i32_0 = arith.constant 0 : i32
    %c0_i32_1 = arith.constant 0 : i32
    return %c0_i32, %c0_i32_0 : i32, i32
  }
  func.func @transform_5(%arg0: i32, %arg1: i32) -> (i32, i32) {
    %c0_i32 = arith.constant 0 : i32
    %c0_i32_0 = arith.constant 0 : i32
    %c0_i32_1 = arith.constant 0 : i32
    return %c0_i32, %c0_i32_0 : i32, i32
  }
  func.func @transform_6(%arg0: i32, %arg1: i32) -> (i32, i32) {
    %0 = arith.muli %arg0, %arg1 : i32
    %c0_i32 = arith.constant 0 : i32
    %c0_i32_0 = arith.constant 0 : i32
    return %0, %c0_i32 : i32, i32
  }
}

</mosaic_0001>

<llo_original>
// kernel: tpu_custom_call.1
$region0: #{tpu_custom_call.1}
  #allocation0 [shape = 'u32[]', space=smem, size = 0x4, offset = 0x4, fixed_abs, tag = 'smem constant byte address 0x4 - core index']
  #allocation1 [shape = 'u32[144,128]{1,0:T(1,128)}', space=vmem, size = 0x12000, scoped, tag = 'internal scratch']
  #allocation2 [shape = 'f32[1,128]{1,0:T(1,128)}', space=vmem, size = 0x200, scoped, tag = 'scratch operand']
  #allocation3 [shape = 'f32[1,128]{1,0:T(1,128)}', space=vmem, size = 0x200, scoped, tag = 'scratch operand']
  #allocation4 [shape = 'f32[1,128]{1,0:T(1,128)}', space=vmem, size = 0x200, scoped, tag = 'scratch operand']
  #allocation5 [shape = 'f32[1,128]{1,0:T(1,128)}', space=vmem, size = 0x200, scoped, tag = 'scratch operand']
  %s0 = inlined_call_operand.hbm [shape: f32[8,768], index: 0, kind: input, shape index: {}]
  %s1 = inlined_call_operand.hbm [shape: f32[768,128], index: 1, kind: input, shape index: {}]
  %s2 = inlined_call_operand.vmem [shape: f32[1,128], index: 2, kind: input, shape index: {}]
  %s3 = inlined_call_operand.vmem [shape: f32[1,128], index: 3, kind: input, shape index: {}]
  %s4 = inlined_call_operand.hbm [shape: f32[128,128], index: 4, kind: input, shape index: {}]
  %s5 = inlined_call_operand.vmem [shape: f32[1,128], index: 5, kind: input, shape index: {}]
  %s6 = inlined_call_operand.hbm [shape: f32[8,128], index: 6, kind: output, shape index: {}]
  %s7 = sld [smem:[#allocation0]]
  $region85: #{tpu_custom_call.1} parent=0
    _
  %s9 = ssub.s32 1, %s7
  %s10 = scalar_select 0, %s9, %s7
  $region1: #{tpu_custom_call.1} parent=0
    #allocation6 [shape = 'u8[24576]{0}', space=vmem, size = 0x6000, scoped, tag = 'input window, operand 0, single buffered']
    #allocation7 [shape = 's32[2]{0}', space=sflag, size = 0x8, scoped, tag = 'scoped memory for tpu_custom_call.1']
    #allocation8 [shape = 's32[2]{0}', space=sflag, size = 0x8, scoped, tag = 'scoped memory for tpu_custom_call.1']
    #allocation9 [shape = 'u8[393216]{0}', space=vmem, size = 0x60000, scoped, tag = 'input window, operand 1, single buffered']
    #allocation10 [shape = 's32[1]{0}', space=sflag, size = 0x4, scoped, tag = 'scoped memory for tpu_custom_call.1']
    #allocation11 [shape = 'u8[65536]{0}', space=vmem, size = 0x10000, scoped, tag = 'input window, operand 4, single buffered']
    #allocation12 [shape = 'u8[8192]{0}', space=vmem, size = 0x2000, scoped, tag = 'output window, operand 0']
    %11 = vsyncpa [#allocation7], 0
    %12 = vsyncpa [#allocation10], 0
    %13 = vsyncpa [#allocation8], 0
    %s14 = scalar_lea.sflag [#allocation8], 1
    %15 = vsyncpa %s14, 0
    loop: start=0, step=1, limit=4
    $region2: #{tpu_custom_call.1} parent=1 // loop_pre_header
      _
    $region3: #{tpu_custom_call.1} parent=1 // loop_header
      %s17 = sphi 0, %s21
      %p18 = scmp.ge.s32.totalorder %s17, 4
      %s24 = sphi 0, %s36
      %s25 = sphi 0, %s32
      %s26 = sphi 0, %s24
      %s27 = sphi 0, %s25
      %s28 = sphi 0, %s26
      %s29 = sphi 0, %s27
      %s39 = sphi 0, %s41
      %s42 = sphi 0, %s39
      %s43 = sphi 0, %s42
      %s59 = sphi 0, %s43
      %s63 = sphi 0, %s63
      %s65 = sphi 0, %s63
      %s66 = sphi 0, %s65
      %s80 = sphi 0, %s66
      %s84 = sphi 0, %s84
      %s86 = sphi 0, %s84
      %s87 = sphi 0, %s86
      %s101 = sphi 0, %s87
      %s105 = sphi 0, %s105
      %s107 = sphi 0, %s105
      %s108 = sphi 0, %s107
      %s122 = sphi 0, %s108
      %s126 = sphi 0, %s126
      %s128 = sphi 0, %s126
      %s129 = sphi 0, %s128
      %s143 = sphi 0, %s129
      %s147 = sphi 0, %s147
      %s149 = sphi 0, %s147
      %s150 = sphi 0, %s149
      %s164 = sphi 0, %s150
      %s172 = sphi 0, %s174
      %s175 = sphi 0, %s172
      %s176 = sphi 0, %s175
      %s192 = sphi 0, %s176
    $region4: #{tpu_custom_call.1} parent=1 // loop_header_branch
      %20 = sbr.rel (%p18) target = $region8
    $region5: #{tpu_custom_call.1} parent=1 // loop_body
      %s22 = ssub.s32 %s17, 1
      %s23 = ssub.s32 %s17, 2
      %s30 = sadd.s32 1, %s25
      %p31 = scmp.ge.s32.totalorder %s30, 1
      %s32 = scalar_select %p31, 0, %s30
      %s33 = sadd.s32 1, %s24
      %s34 = scalar_select %p31, %s33, %s24
      %p35 = scmp.ge.s32.totalorder %s34, 2
      %s36 = scalar_select %p35, 0, %s34
      %s37 = ssub.s32 %s25, %s32
      %p38 = scmp.eq.s32.totalorder %s37, 0
      %s40 = sadd.s32 %s39, 1
      %s41 = scalar_select %p38, %s39, %s40
      %p44 = pneg %p38
      %p45 = scmp.eq.s32.totalorder %s17, 1
      %p46 = por %p44, %p45
      %p47 = scmp.ne.s32.totalorder %s39, %s42
      %p48 = scmp.eq.s32.totalorder %s17, 0
      %p49 = por %p47, %p48
      %p50 = scmp.ne.s32.totalorder %s39, %s42
      %p51 = scmp.eq.s32.totalorder %s22, 1
      %p52 = por %p50, %p51
      %p53 = scmp.ne.s32.totalorder %s42, %s43
      %p54 = scmp.eq.s32.totalorder %s22, 0
      %p55 = por %p53, %p54
      %p56 = scmp.ne.s32.totalorder %s42, %s43
      %p57 = scmp.eq.s32.totalorder %s23, 1
      %p58 = por %p56, %p57
      %p60 = scmp.ne.s32.totalorder %s43, %s59
      %p61 = scmp.eq.s32.totalorder %s23, 0
      %p62 = por %p60, %p61
      %s64 = sadd.s32 %s63, 1
      %p67 = scmp.eq.s32.totalorder %s17, 1
      %p68 = scmp.ne.s32.totalorder %s63, %s65
      %p69 = scmp.eq.s32.totalorder %s17, 0
      %p70 = por %p68, %p69
      %p71 = scmp.ne.s32.totalorder %s63, %s65
      %p72 = scmp.eq.s32.totalorder %s22, 1
      %p73 = por %p71, %p72
      %p74 = scmp.ne.s32.totalorder %s65, %s66
      %p75 = scmp.eq.s32.totalorder %s22, 0
      %p76 = por %p74, %p75
      %p77 = scmp.ne.s32.totalorder %s65, %s66
      %p78 = scmp.eq.s32.totalorder %s23, 1
      %p79 = por %p77, %p78
      %p81 = scmp.ne.s32.totalorder %s66, %s80
      %p82 = scmp.eq.s32.totalorder %s23, 0
      %p83 = por %p81, %p82
      %s85 = sadd.s32 %s84, 1
      %p88 = scmp.eq.s32.totalorder %s17, 1
      %p89 = scmp.ne.s32.totalorder %s84, %s86
      %p90 = scmp.eq.s32.totalorder %s17, 0
      %p91 = por %p89, %p90
      %p92 = scmp.ne.s32.totalorder %s84, %s86
      %p93 = scmp.eq.s32.totalorder %s22, 1
      %p94 = por %p92, %p93
      %p95 = scmp.ne.s32.totalorder %s86, %s87
      %p96 = scmp.eq.s32.totalorder %s22, 0
      %p97 = por %p95, %p96
      %p98 = scmp.ne.s32.totalorder %s86, %s87
      %p99 = scmp.eq.s32.totalorder %s23, 1
      %p100 = por %p98, %p99
      %p102 = scmp.ne.s32.totalorder %s87, %s101
      %p103 = scmp.eq.s32.totalorder %s23, 0
      %p104 = por %p102, %p103
      %s106 = sadd.s32 %s105, 1
      %p109 = scmp.eq.s32.totalorder %s17, 1
      %p110 = scmp.ne.s32.totalorder %s105, %s107
      %p111 = scmp.eq.s32.totalorder %s17, 0
      %p112 = por %p110, %p111
      %p113 = scmp.ne.s32.totalorder %s105, %s107
      %p114 = scmp.eq.s32.totalorder %s22, 1
      %p115 = por %p113, %p114
      %p116 = scmp.ne.s32.totalorder %s107, %s108
      %p117 = scmp.eq.s32.totalorder %s22, 0
      %p118 = por %p116, %p117
      %p119 = scmp.ne.s32.totalorder %s107, %s108
      %p120 = scmp.eq.s32.totalorder %s23, 1
      %p121 = por %p119, %p120
      %p123 = scmp.ne.s32.totalorder %s108, %s122
      %p124 = scmp.eq.s32.totalorder %s23, 0
      %p125 = por %p123, %p124
      %s127 = sadd.s32 %s126, 1
      %p130 = scmp.eq.s32.totalorder %s17, 1
      %p131 = scmp.ne.s32.totalorder %s126, %s128
      %p132 = scmp.eq.s32.totalorder %s17, 0
      %p133 = por %p131, %p132
      %p134 = scmp.ne.s32.totalorder %s126, %s128
      %p135 = scmp.eq.s32.totalorder %s22, 1
      %p136 = por %p134, %p135
      %p137 = scmp.ne.s32.totalorder %s128, %s129
      %p138 = scmp.eq.s32.totalorder %s22, 0
      %p139 = por %p137, %p138
      %p140 = scmp.ne.s32.totalorder %s128, %s129
      %p141 = scmp.eq.s32.totalorder %s23, 1
      %p142 = por %p140, %p141
      %p144 = scmp.ne.s32.totalorder %s129, %s143
      %p145 = scmp.eq.s32.totalorder %s23, 0
      %p146 = por %p144, %p145
      %s148 = sadd.s32 %s147, 1
      %p151 = scmp.eq.s32.totalorder %s17, 1
      %p152 = scmp.ne.s32.totalorder %s147, %s149
      %p153 = scmp.eq.s32.totalorder %s17, 0
      %p154 = por %p152, %p153
      %p155 = scmp.ne.s32.totalorder %s147, %s149
      %p156 = scmp.eq.s32.totalorder %s22, 1
      %p157 = por %p155, %p156
      %p158 = scmp.ne.s32.totalorder %s149, %s150
      %p159 = scmp.eq.s32.totalorder %s22, 0
      %p160 = por %p158, %p159
      %p161 = scmp.ne.s32.totalorder %s149, %s150
      %p162 = scmp.eq.s32.totalorder %s23, 1
      %p163 = por %p161, %p162
      %p165 = scmp.ne.s32.totalorder %s150, %s164
      %p166 = scmp.eq.s32.totalorder %s23, 0
      %p167 = por %p165, %p166
      %s168 = smul.u32 %s24, %s25
      %s169 = smul.u32 %s36, %s32
      %s170 = ssub.s32 %s168, %s169
      %p171 = scmp.eq.s32.totalorder %s170, 0
      %s173 = sadd.s32 %s172, 1
      %s174 = scalar_select %p171, %s172, %s173
      %p177 = pneg %p171
      %p178 = scmp.eq.s32.totalorder %s17, 1
      %p179 = por %p177, %p178
      %p180 = scmp.ne.s32.totalorder %s172, %s175
      %p181 = scmp.eq.s32.totalorder %s17, 0
      %p182 = por %p180, %p181
      %p183 = scmp.ne.s32.totalorder %s172, %s175
      %p184 = scmp.eq.s32.totalorder %s22, 1
      %p185 = por %p183, %p184
      %p186 = scmp.ne.s32.totalorder %s175, %s176
      %p187 = scmp.eq.s32.totalorder %s22, 0
      %p188 = por %p186, %p187
      %p189 = scmp.ne.s32.totalorder %s175, %s176
      %p190 = scmp.eq.s32.totalorder %s23, 1
      %p191 = por %p189, %p190
      %p193 = scmp.ne.s32.totalorder %s176, %s192
      %p194 = scmp.eq.s32.totalorder %s23, 0
      %p195 = por %p193, %p194
      %p196 = scmp.le.s32.totalorder 1, %s17
      %p197 = scmp.lt.s32.totalorder %s17, 3
      %p198 = pnand %p196, %p197
      %p199 = pneg %p198
      // Predicated region
      $region9: #{tpu_custom_call.1} parent=5 // pred_check
        _
      $region10: #{tpu_custom_call.1} parent=5 // pred_check_branch
        %201 = sbr.rel (%p198) target = $region12
      $region11: #{tpu_custom_call.1} parent=5 // pred_region
        %s202 = ssub.s32 %s17, 1
        // Predicated region
        $region13: #{tpu_custom_call.1} parent=11 // pred_check
          %p203 = pneg %p55
        $region14: #{tpu_custom_call.1} parent=11 // pred_check_branch
          %205 = sbr.rel (%p203) target = $region16
        $region15: #{tpu_custom_call.1} parent=11 // pred_region
          %s207 = ssub.s32 768, 768
          %208 = vsyncadd [#allocation7], %s207
          %s209 = smul.addr %s27, 6
          %s210 = smul.addr %s209, 128
          %s211 = scalar_lea.hbm %s0, %s210
          %s213 = sshll.u32 [#allocation6], 4
          %s214 = int_to_ptr.vmem [resolvable:$true] %s213
          %216 = dma.hbm_to_vmem [thread:$0]  %s211, 768, %s214, [#allocation7]
        $region16: #{tpu_custom_call.1} parent=11 // pred_fallthru
          _
        // Predicated region
        $region17: #{tpu_custom_call.1} parent=11 // pred_check
          %p217 = pneg %p76
        $region18: #{tpu_custom_call.1} parent=11 // pred_check_branch
          %219 = sbr.rel (%p217) target = $region20
        $region19: #{tpu_custom_call.1} parent=11 // pred_region
          %s221 = ssub.s32 12288, 12288
          %222 = vsyncadd [#allocation10], %s221
          %s223 = sshll.u32 [#allocation9], 4
          %s224 = int_to_ptr.vmem [resolvable:$true] %s223
          %229 = dma.hbm_to_vmem [thread:$0]  %s1, 12288, %s224, [#allocation10], 128, 128, 8
        $region20: #{tpu_custom_call.1} parent=11 // pred_fallthru
          _
        // Predicated region
        $region21: #{tpu_custom_call.1} parent=11 // pred_check
          %p230 = pneg %p97
        $region22: #{tpu_custom_call.1} parent=11 // pred_check_branch
          %232 = sbr.rel (%p230) target = $region24
        $region23: #{tpu_custom_call.1} parent=11 // pred_region
          _
        $region24: #{tpu_custom_call.1} parent=11 // pred_fallthru
          _
        // Predicated region
        $region25: #{tpu_custom_call.1} parent=11 // pred_check
          %p233 = pneg %p118
        $region26: #{tpu_custom_call.1} parent=11 // pred_check_branch
          %235 = sbr.rel (%p233) target = $region28
        $region27: #{tpu_custom_call.1} parent=11 // pred_region
          _
        $region28: #{tpu_custom_call.1} parent=11 // pred_fallthru
          _
        // Predicated region
        $region29: #{tpu_custom_call.1} parent=11 // pred_check
          %p236 = pneg %p139
        $region30: #{tpu_custom_call.1} parent=11 // pred_check_branch
          %238 = sbr.rel (%p236) target = $region32
        $region31: #{tpu_custom_call.1} parent=11 // pred_region
          %s240 = ssub.s32 2048, 2048
          %241 = vsyncadd [#allocation10], %s240
          %s242 = sshll.u32 [#allocation11], 4
          %s243 = int_to_ptr.vmem [resolvable:$true] %s242
          %248 = dma.hbm_to_vmem [thread:$0]  %s4, 2048, %s243, [#allocation10], 128, 128, 8
        $region32: #{tpu_custom_call.1} parent=11 // pred_fallthru
          _
        // Predicated region
        $region33: #{tpu_custom_call.1} parent=11 // pred_check
          %p249 = pneg %p160
        $region34: #{tpu_custom_call.1} parent=11 // pred_check_branch
          %251 = sbr.rel (%p249) target = $region36
        $region35: #{tpu_custom_call.1} parent=11 // pred_region
          _
        $region36: #{tpu_custom_call.1} parent=11 // pred_fallthru
          _
      $region12: #{tpu_custom_call.1} parent=5 // pred_fallthru
        _
      %p252 = scmp.lt.s32.totalorder %s17, 2
      // Predicated region
      $region37: #{tpu_custom_call.1} parent=5 // pred_check
        %p253 = pneg %p252
      $region38: #{tpu_custom_call.1} parent=5 // pred_check_branch
        %255 = sbr.rel (%p253) target = $region40
      $region39: #{tpu_custom_call.1} parent=5 // pred_region
        _
      $region40: #{tpu_custom_call.1} parent=5 // pred_fallthru
        _
      %p256 = scmp.le.s32.totalorder 1, %s17
      %p257 = scmp.lt.s32.totalorder %s17, 3
      %p258 = pnand %p256, %p257
      %p259 = pneg %p258
      // Predicated region
      $region41: #{tpu_custom_call.1} parent=5 // pred_check
        _
      $region42: #{tpu_custom_call.1} parent=5 // pred_check_branch
        %261 = sbr.rel (%p258) target = $region44
      $region43: #{tpu_custom_call.1} parent=5 // pred_region
        %s262 = ssub.s32 %s17, 1
        // Predicated region
        $region45: #{tpu_custom_call.1} parent=43 // pred_check
          %p263 = pneg %p55
        $region46: #{tpu_custom_call.1} parent=43 // pred_check_branch
          %265 = sbr.rel (%p263) target = $region48
        $region47: #{tpu_custom_call.1} parent=43 // pred_region
          %266 = dma.done [#allocation7], 768
        $region48: #{tpu_custom_call.1} parent=43 // pred_fallthru
          _
        // Predicated region
        $region49: #{tpu_custom_call.1} parent=43 // pred_check
          %p267 = pneg %p76
        $region50: #{tpu_custom_call.1} parent=43 // pred_check_branch
          %269 = sbr.rel (%p267) target = $region52
        $region51: #{tpu_custom_call.1} parent=43 // pred_region
          %270 = dma.done [#allocation10], 12288
        $region52: #{tpu_custom_call.1} parent=43 // pred_fallthru
          _
        // Predicated region
        $region53: #{tpu_custom_call.1} parent=43 // pred_check
          %p271 = pneg %p139
        $region54: #{tpu_custom_call.1} parent=43 // pred_check_branch
          %273 = sbr.rel (%p271) target = $region56
        $region55: #{tpu_custom_call.1} parent=43 // pred_region
          %274 = dma.done [#allocation10], 2048
        $region56: #{tpu_custom_call.1} parent=43 // pred_fallthru
          _
        %p275 = pneg %p55
        %p276 = pneg %p52
        %p277 = pneg %p76
        %p278 = pneg %p73
        %p279 = pneg %p97
        %p280 = pneg %p94
        %p281 = pneg %p118
        %p282 = pneg %p115
        %p283 = pneg %p139
        %p284 = pneg %p136
        %p285 = pneg %p160
        %p286 = pneg %p157
        %p287 = pneg %p188
        %p288 = pneg %p185
        %s289 = sand.u32 %s175, 1
        %s290 = scalar_lea.sflag [#allocation8], %s289
        %s291 = sand.u32 %s175, 1
        %s292 = smul.addr %s291, 8
        %s293 = scalar_lea.vmem [#allocation12], %s292
        %s294 = smul.u32 %s26, %s27
        %v295 = vld [vmem:[#allocation6] sm:$0xff]
        %v296 = vld [vmem:[#allocation6 + $0x8] sm:$0xff]
        %v297 = vld [vmem:[#allocation6 + $0x10] sm:$0xff]
        %v298 = vld [vmem:[#allocation6 + $0x18] sm:$0xff]
        %v299 = vld [vmem:[#allocation6 + $0x20] sm:$0xff]
        %v300 = vld [vmem:[#allocation6 + $0x28] sm:$0xff]
        %v301 = vld [vmem:[#allocation9] sm:$0xff]
        %v302 = vld [vmem:[#allocation9 + $0x8] sm:$0xff]
        %v303 = vld [vmem:[#allocation9 + $0x10] sm:$0xff]
        %v304 = vld [vmem:[#allocation9 + $0x18] sm:$0xff]
        %v305 = vld [vmem:[#allocation9 + $0x20] sm:$0xff]
        %v306 = vld [vmem:[#allocation9 + $0x28] sm:$0xff]
        %v307 = vld [vmem:[#allocation9 + $0x30] sm:$0xff]
        %v308 = vld [vmem:[#allocation9 + $0x38] sm:$0xff]
        %v309 = vld [vmem:[#allocation9 + $0x40] sm:$0xff]
        %v310 = vld [vmem:[#allocation9 + $0x48] sm:$0xff]
        %v311 = vld [vmem:[#allocation9 + $0x50] sm:$0xff]
        %v312 = vld [vmem:[#allocation9 + $0x58] sm:$0xff]
        %v313 = vld [vmem:[#allocation9 + $0x60] sm:$0xff]
        %v314 = vld [vmem:[#allocation9 + $0x68] sm:$0xff]
        %v315 = vld [vmem:[#allocation9 + $0x70] sm:$0xff]
        %v316 = vld [vmem:[#allocation9 + $0x78] sm:$0xff]
        %v317 = vld [vmem:[#allocation9 + $0x80] sm:$0xff]
        %v318 = vld [vmem:[#allocation9 + $0x88] sm:$0xff]
        %v319 = vld [vmem:[#allocation9 + $0x90] sm:$0xff]
        %v320 = vld [vmem:[#allocation9 + $0x98] sm:$0xff]
        %v321 = vld [vmem:[#allocation9 + $0xa0] sm:$0xff]
        %v322 = vld [vmem:[#allocation9 + $0xa8] sm:$0xff]
        %v323 = vld [vmem:[#allocation9 + $0xb0] sm:$0xff]
        %v324 = vld [vmem:[#allocation9 + $0xb8] sm:$0xff]
        %v325 = vld [vmem:[#allocation9 + $0xc0] sm:$0xff]
        %v326 = vld [vmem:[#allocation9 + $0xc8] sm:$0xff]
        %v327 = vld [vmem:[#allocation9 + $0xd0] sm:$0xff]
        %v328 = vld [vmem:[#allocation9 + $0xd8] sm:$0xff]
        %v329 = vld [vmem:[#allocation9 + $0xe0] sm:$0xff]
        %v330 = vld [vmem:[#allocation9 + $0xe8] sm:$0xff]
        %v331 = vld [vmem:[#allocation9 + $0xf0] sm:$0xff]
        %v332 = vld [vmem:[#allocation9 + $0xf8] sm:$0xff]
        %v333 = vld [vmem:[#allocation9 + $0x100] sm:$0xff]
        %v334 = vld [vmem:[#allocation9 + $0x108] sm:$0xff]
        %v335 = vld [vmem:[#allocation9 + $0x110] sm:$0xff]
        %v336 = vld [vmem:[#allocation9 + $0x118] sm:$0xff]
        %v337 = vld [vmem:[#allocation9 + $0x120] sm:$0xff]
        %v338 = vld [vmem:[#allocation9 + $0x128] sm:$0xff]
        %v339 = vld [vmem:[#allocation9 + $0x130] sm:$0xff]
        %v340 = vld [vmem:[#allocation9 + $0x138] sm:$0xff]
        %v341 = vld [vmem:[#allocation9 + $0x140] sm:$0xff]
        %v342 = vld [vmem:[#allocation9 + $0x148] sm:$0xff]
        %v343 = vld [vmem:[#allocation9 + $0x150] sm:$0xff]
        %v344 = vld [vmem:[#allocation9 + $0x158] sm:$0xff]
        %v345 = vld [vmem:[#allocation9 + $0x160] sm:$0xff]
        %v346 = vld [vmem:[#allocation9 + $0x168] sm:$0xff]
        %v347 = vld [vmem:[#allocation9 + $0x170] sm:$0xff]
        %v348 = vld [vmem:[#allocation9 + $0x178] sm:$0xff]
        %v349 = vld [vmem:[#allocation9 + $0x180] sm:$0xff]
        %v350 = vld [vmem:[#allocation9 + $0x188] sm:$0xff]
        %v351 = vld [vmem:[#allocation9 + $0x190] sm:$0xff]
        %v352 = vld [vmem:[#allocation9 + $0x198] sm:$0xff]
        %v353 = vld [vmem:[#allocation9 + $0x1a0] sm:$0xff]
        %v354 = vld [vmem:[#allocation9 + $0x1a8] sm:$0xff]
        %v355 = vld [vmem:[#allocation9 + $0x1b0] sm:$0xff]
        %v356 = vld [vmem:[#allocation9 + $0x1b8] sm:$0xff]
        %v357 = vld [vmem:[#allocation9 + $0x1c0] sm:$0xff]
        %v358 = vld [vmem:[#allocation9 + $0x1c8] sm:$0xff]
        %v359 = vld [vmem:[#allocation9 + $0x1d0] sm:$0xff]
        %v360 = vld [vmem:[#allocation9 + $0x1d8] sm:$0xff]
        %v361 = vld [vmem:[#allocation9 + $0x1e0] sm:$0xff]
        %v362 = vld [vmem:[#allocation9 + $0x1e8] sm:$0xff]
        %v363 = vld [vmem:[#allocation9 + $0x1f0] sm:$0xff]
        %v364 = vld [vmem:[#allocation9 + $0x1f8] sm:$0xff]
        %v365 = vld [vmem:[#allocation9 + $0x200] sm:$0xff]
        %v366 = vld [vmem:[#allocation9 + $0x208] sm:$0xff]
        %v367 = vld [vmem:[#allocation9 + $0x210] sm:$0xff]
        %v368 = vld [vmem:[#allocation9 + $0x218] sm:$0xff]
        %v369 = vld [vmem:[#allocation9 + $0x220] sm:$0xff]
        %v370 = vld [vmem:[#allocation9 + $0x228] sm:$0xff]
        %v371 = vld [vmem:[#allocation9 + $0x230] sm:$0xff]
        %v372 = vld [vmem:[#allocation9 + $0x238] sm:$0xff]
        %v373 = vld [vmem:[#allocation9 + $0x240] sm:$0xff]
        %v374 = vld [vmem:[#allocation9 + $0x248] sm:$0xff]
        %v375 = vld [vmem:[#allocation9 + $0x250] sm:$0xff]
        %v376 = vld [vmem:[#allocation9 + $0x258] sm:$0xff]
        %v377 = vld [vmem:[#allocation9 + $0x260] sm:$0xff]
        %v378 = vld [vmem:[#allocation9 + $0x268] sm:$0xff]
        %v379 = vld [vmem:[#allocation9 + $0x270] sm:$0xff]
        %v380 = vld [vmem:[#allocation9 + $0x278] sm:$0xff]
        %v381 = vld [vmem:[#allocation9 + $0x280] sm:$0xff]
        %v382 = vld [vmem:[#allocation9 + $0x288] sm:$0xff]
        %v383 = vld [vmem:[#allocation9 + $0x290] sm:$0xff]
        %v384 = vld [vmem:[#allocation9 + $0x298] sm:$0xff]
        %v385 = vld [vmem:[#allocation9 + $0x2a0] sm:$0xff]
        %v386 = vld [vmem:[#allocation9 + $0x2a8] sm:$0xff]
        %v387 = vld [vmem:[#allocation9 + $0x2b0] sm:$0xff]
        %v388 = vld [vmem:[#allocation9 + $0x2b8] sm:$0xff]
        %v389 = vld [vmem:[#allocation9 + $0x2c0] sm:$0xff]
        %v390 = vld [vmem:[#allocation9 + $0x2c8] sm:$0xff]
        %v391 = vld [vmem:[#allocation9 + $0x2d0] sm:$0xff]
        %v392 = vld [vmem:[#allocation9 + $0x2d8] sm:$0xff]
        %v393 = vld [vmem:[#allocation9 + $0x2e0] sm:$0xff]
        %v394 = vld [vmem:[#allocation9 + $0x2e8] sm:$0xff]
        %v395 = vld [vmem:[#allocation9 + $0x2f0] sm:$0xff]
        %v396 = vld [vmem:[#allocation9 + $0x2f8] sm:$0xff]
        %397 = vmatprep.subr.mxu0 0.0
        %398 = vmatpush1.msra.mxu0 %v301
        %399 = vmatprep.subr.mxu0 0.0
        %400 = vmatpush1.msra.mxu0 %v302
        %401 = vmatprep.subr.mxu0 0.0
        %402 = vmatpush1.msra.mxu0 %v303
        %403 = vmatprep.subr.mxu0 0.0
        %404 = vmatpush1.msra.mxu0 %v304
        %405 = vmatprep.subr.mxu0 0.0
        %406 = vmatpush1.msra.mxu0 %v305
        %407 = vmatprep.subr.mxu0 0.0
        %408 = vmatpush1.msra.mxu0 %v306
        %409 = vmatprep.subr.mxu0 0.0
        %410 = vmatpush1.msra.mxu0 %v307
        %411 = vmatprep.subr.mxu0 0.0
        %412 = vmatpush1.msra.mxu0 %v308
        %413 = vmatprep.subr.mxu0 0.0
        %414 = vmatpush1.msra.mxu0 %v309
        %415 = vmatprep.subr.mxu0 0.0
        %416 = vmatpush1.msra.mxu0 %v310
        %417 = vmatprep.subr.mxu0 0.0
        %418 = vmatpush1.msra.mxu0 %v311
        %419 = vmatprep.subr.mxu0 0.0
        %420 = vmatpush1.msra.mxu0 %v312
        %421 = vmatprep.subr.mxu0 0.0
        %422 = vmatpush1.msra.mxu0 %v313
        %423 = vmatprep.subr.mxu0 0.0
        %424 = vmatpush1.msra.mxu0 %v314
        %425 = vmatprep.subr.mxu0 0.0
        %426 = vmatpush1.msra.mxu0 %v315
        %427 = vmatprep.subr.mxu0 0.0
        %428 = vmatpush1.msra.mxu0 %v316
        %429 = vmatprep.subr.mxu0 0.0
        %430 = vmatpush1.msra.mxu0 %v317
        %431 = vmatprep.subr.mxu0 0.0
        %432 = vmatpush1.msra.mxu0 %v318
        %433 = vmatprep.subr.mxu0 0.0
        %434 = vmatpush1.msra.mxu0 %v319
        %435 = vmatprep.subr.mxu0 0.0
        %436 = vmatpush1.msra.mxu0 %v320
        %437 = vmatprep.subr.mxu0 0.0
        %438 = vmatpush1.msra.mxu0 %v321
        %439 = vmatprep.subr.mxu0 0.0
        %440 = vmatpush1.msra.mxu0 %v322
        %441 = vmatprep.subr.mxu0 0.0
        %442 = vmatpush1.msra.mxu0 %v323
        %443 = vmatprep.subr.mxu0 0.0
        %444 = vmatpush1.msra.mxu0 %v324
        %445 = vmatprep.subr.mxu0 0.0
        %446 = vmatpush1.msra.mxu0 %v325
        %447 = vmatprep.subr.mxu0 0.0
        %448 = vmatpush1.msra.mxu0 %v326
        %449 = vmatprep.subr.mxu0 0.0
        %450 = vmatpush1.msra.mxu0 %v327
        %451 = vmatprep.subr.mxu0 0.0
        %452 = vmatpush1.msra.mxu0 %v328
        %453 = vmatprep.subr.mxu0 0.0
        %454 = vmatpush1.msra.mxu0 %v329
        %455 = vmatprep.subr.mxu0 0.0
        %456 = vmatpush1.msra.mxu0 %v330
        %457 = vmatprep.subr.mxu0 0.0
        %458 = vmatpush1.msra.mxu0 %v331
        %459 = vmatprep.subr.mxu0 0.0
        %460 = vmatpush1.msra.mxu0 %v332
        %461 = vmatprep.mubr.f32.mxu0 %v296
        %462 = vmatmul.mubr.f32.gmra.mrb[0].mxu0 %v295
        %v463 = vpop.f32.mrb[0].mxu0
        %v464 = vadd.f32 0.0, %v463
        %v465 = vpop.f32.mrb[0].mxu0
        %466 = vdwg.mxu0
        %467 = vmatprep.subr.mxu0 0.0
        %468 = vmatpush1.msra.mxu0 %v333
        %469 = vmatprep.subr.mxu0 0.0
        %470 = vmatpush1.msra.mxu0 %v334
        %471 = vmatprep.subr.mxu0 0.0
        %472 = vmatpush1.msra.mxu0 %v335
        %473 = vmatprep.subr.mxu0 0.0
        %474 = vmatpush1.msra.mxu0 %v336
        %475 = vmatprep.subr.mxu0 0.0
        %476 = vmatpush1.msra.mxu0 %v337
        %477 = vmatprep.subr.mxu0 0.0
        %478 = vmatpush1.msra.mxu0 %v338
        %479 = vmatprep.subr.mxu0 0.0
        %480 = vmatpush1.msra.mxu0 %v339
        %481 = vmatprep.subr.mxu0 0.0
        %482 = vmatpush1.msra.mxu0 %v340
        %483 = vmatprep.subr.mxu0 0.0
        %484 = vmatpush1.msra.mxu0 %v341
        %485 = vmatprep.subr.mxu0 0.0
        %486 = vmatpush1.msra.mxu0 %v342
        %487 = vmatprep.subr.mxu0 0.0
        %488 = vmatpush1.msra.mxu0 %v343
        %489 = vmatprep.subr.mxu0 0.0
        %490 = vmatpush1.msra.mxu0 %v344
        %491 = vmatprep.subr.mxu0 0.0
        %492 = vmatpush1.msra.mxu0 %v345
        %493 = vmatprep.subr.mxu0 0.0
        %494 = vmatpush1.msra.mxu0 %v346
        %495 = vmatprep.subr.mxu0 0.0
        %496 = vmatpush1.msra.mxu0 %v347
        %497 = vmatprep.subr.mxu0 0.0
        %498 = vmatpush1.msra.mxu0 %v348
        %499 = vmatprep.subr.mxu0 0.0
        %500 = vmatpush1.msra.mxu0 %v349
        %501 = vmatprep.subr.mxu0 0.0
        %502 = vmatpush1.msra.mxu0 %v350
        %503 = vmatprep.subr.mxu0 0.0
        %504 = vmatpush1.msra.mxu0 %v351
        %505 = vmatprep.subr.mxu0 0.0
        %506 = vmatpush1.msra.mxu0 %v352
        %507 = vmatprep.subr.mxu0 0.0
        %508 = vmatpush1.msra.mxu0 %v353
        %509 = vmatprep.subr.mxu0 0.0
        %510 = vmatpush1.msra.mxu0 %v354
        %511 = vmatprep.subr.mxu0 0.0
        %512 = vmatpush1.msra.mxu0 %v355
        %513 = vmatprep.subr.mxu0 0.0
        %514 = vmatpush1.msra.mxu0 %v356
        %515 = vmatprep.subr.mxu0 0.0
        %516 = vmatpush1.msra.mxu0 %v357
        %517 = vmatprep.subr.mxu0 0.0
        %518 = vmatpush1.msra.mxu0 %v358
        %519 = vmatprep.subr.mxu0 0.0
        %520 = vmatpush1.msra.mxu0 %v359
        %521 = vmatprep.subr.mxu0 0.0
        %522 = vmatpush1.msra.mxu0 %v360
        %523 = vmatprep.subr.mxu0 0.0
        %524 = vmatpush1.msra.mxu0 %v361
        %525 = vmatprep.subr.mxu0 0.0
        %526 = vmatpush1.msra.mxu0 %v362
        %527 = vmatprep.subr.mxu0 0.0
        %528 = vmatpush1.msra.mxu0 %v363
        %529 = vmatprep.subr.mxu0 0.0
        %530 = vmatpush1.msra.mxu0 %v364
        %531 = vmatprep.mubr.f32.mxu0 %v298
        %532 = vmatmul.mubr.f32.gmra.mrb[0].mxu0 %v297
        %v533 = vpop.f32.mrb[0].mxu0
        %v534 = vadd.f32 %v464, %v533
        %v535 = vpop.f32.mrb[0].mxu0
        %536 = vdwg.mxu0
        %537 = vmatprep.subr.mxu0 0.0
        %538 = vmatpush1.msra.mxu0 %v365
        %539 = vmatprep.subr.mxu0 0.0
        %540 = vmatpush1.msra.mxu0 %v366
        %541 = vmatprep.subr.mxu0 0.0
        %542 = vmatpush1.msra.mxu0 %v367
        %543 = vmatprep.subr.mxu0 0.0
        %544 = vmatpush1.msra.mxu0 %v368
        %545 = vmatprep.subr.mxu0 0.0
        %546 = vmatpush1.msra.mxu0 %v369
        %547 = vmatprep.subr.mxu0 0.0
        %548 = vmatpush1.msra.mxu0 %v370
        %549 = vmatprep.subr.mxu0 0.0
        %550 = vmatpush1.msra.mxu0 %v371
        %551 = vmatprep.subr.mxu0 0.0
        %552 = vmatpush1.msra.mxu0 %v372
        %553 = vmatprep.subr.mxu0 0.0
        %554 = vmatpush1.msra.mxu0 %v373
        %555 = vmatprep.subr.mxu0 0.0
        %556 = vmatpush1.msra.mxu0 %v374
        %557 = vmatprep.subr.mxu0 0.0
        %558 = vmatpush1.msra.mxu0 %v375
        %559 = vmatprep.subr.mxu0 0.0
        %560 = vmatpush1.msra.mxu0 %v376
        %561 = vmatprep.subr.mxu0 0.0
        %562 = vmatpush1.msra.mxu0 %v377
        %563 = vmatprep.subr.mxu0 0.0
        %564 = vmatpush1.msra.mxu0 %v378
        %565 = vmatprep.subr.mxu0 0.0
        %566 = vmatpush1.msra.mxu0 %v379
        %567 = vmatprep.subr.mxu0 0.0
        %568 = vmatpush1.msra.mxu0 %v380
        %569 = vmatprep.subr.mxu0 0.0
        %570 = vmatpush1.msra.mxu0 %v381
        %571 = vmatprep.subr.mxu0 0.0
        %572 = vmatpush1.msra.mxu0 %v382
        %573 = vmatprep.subr.mxu0 0.0
        %574 = vmatpush1.msra.mxu0 %v383
        %575 = vmatprep.subr.mxu0 0.0
        %576 = vmatpush1.msra.mxu0 %v384
        %577 = vmatprep.subr.mxu0 0.0
        %578 = vmatpush1.msra.mxu0 %v385
        %579 = vmatprep.subr.mxu0 0.0
        %580 = vmatpush1.msra.mxu0 %v386
        %581 = vmatprep.subr.mxu0 0.0
        %582 = vmatpush1.msra.mxu0 %v387
        %583 = vmatprep.subr.mxu0 0.0
        %584 = vmatpush1.msra.mxu0 %v388
        %585 = vmatprep.subr.mxu0 0.0
        %586 = vmatpush1.msra.mxu0 %v389
        %587 = vmatprep.subr.mxu0 0.0
        %588 = vmatpush1.msra.mxu0 %v390
        %589 = vmatprep.subr.mxu0 0.0
        %590 = vmatpush1.msra.mxu0 %v391
        %591 = vmatprep.subr.mxu0 0.0
        %592 = vmatpush1.msra.mxu0 %v392
        %593 = vmatprep.subr.mxu0 0.0
        %594 = vmatpush1.msra.mxu0 %v393
        %595 = vmatprep.subr.mxu0 0.0
        %596 = vmatpush1.msra.mxu0 %v394
        %597 = vmatprep.subr.mxu0 0.0
        %598 = vmatpush1.msra.mxu0 %v395
        %599 = vmatprep.subr.mxu0 0.0
        %600 = vmatpush1.msra.mxu0 %v396
        %601 = vmatprep.mubr.f32.mxu0 %v300
        %602 = vmatmul.mubr.f32.gmra.mrb[0].mxu0 %v299
        %v603 = vpop.f32.mrb[0].mxu0
        %v604 = vadd.f32 %v534, %v603
        %v605 = vpop.f32.mrb[0].mxu0
        %606 = vdwg.mxu0
        %p607 = scmp.eq.s32.totalorder %s26, 0
        // Predicated region
        $region57: #{tpu_custom_call.1} parent=43 // pred_check
          %p608 = pneg %p607
        $region58: #{tpu_custom_call.1} parent=43 // pred_check_branch
          %610 = sbr.rel (%p608) target = $region60
        $region59: #{tpu_custom_call.1} parent=43 // pred_region
          %p611 = scmp.eq.s32.totalorder %s27, 0
          // Predicated region
          $region61: #{tpu_custom_call.1} parent=59 // pred_check
            %p612 = pneg %p611
          $region62: #{tpu_custom_call.1} parent=59 // pred_check_branch
            %614 = sbr.rel (%p612) target = $region64
          $region63: #{tpu_custom_call.1} parent=59 // pred_region
            %615 = vst [vmem:[#allocation2] sm:$0x1] 0.0
            %616 = vst [vmem:[#allocation3] sm:$0x1] 0.0
          $region64: #{tpu_custom_call.1} parent=59 // pred_fallthru
            _
          %v617 = vld [vmem:[#allocation2] sm:$0x1]
          %v618 = vrot.slane %v604, 4
          %v619 = vadd.f32 %v604, %v618
          %v620 = vrot.slane %v619, 2
          %v621 = vadd.f32 %v619, %v620
          %v622 = vrot.slane %v621, 1
          %v623 = vadd.f32 %v621, %v622
          %v624 = vadd.f32 %v617, %v623
          %625 = vst [vmem:[#allocation2] sm:$0x1] %v624
          %v626 = vld [vmem:[#allocation3] sm:$0x1]
          %v627 = vmul.f32 %v604, %v604
          %v628 = vrot.slane %v627, 4
          %v629 = vadd.f32 %v627, %v628
          %v630 = vrot.slane %v629, 2
          %v631 = vadd.f32 %v629, %v630
          %v632 = vrot.slane %v631, 1
          %v633 = vadd.f32 %v631, %v632
          %v634 = vadd.f32 %v626, %v633
          %635 = vst [vmem:[#allocation3] sm:$0x1] %v634
        $region60: #{tpu_custom_call.1} parent=43 // pred_fallthru
          _
        %p636 = scmp.eq.s32.totalorder %s26, 1
        // Predicated region
        $region65: #{tpu_custom_call.1} parent=43 // pred_check
          %p637 = pneg %p636
        $region66: #{tpu_custom_call.1} parent=43 // pred_check_branch
          %639 = sbr.rel (%p637) target = $region68
        $region67: #{tpu_custom_call.1} parent=43 // pred_region
          %p640 = scmp.eq.s32.totalorder %s27, 0
          // Predicated region
          $region69: #{tpu_custom_call.1} parent=67 // pred_check
            %p641 = pneg %p640
          $region70: #{tpu_custom_call.1} parent=67 // pred_check_branch
            %643 = sbr.rel (%p641) target = $region72
          $region71: #{tpu_custom_call.1} parent=67 // pred_region
            %v644 = vld [vmem:[#allocation2] sm:$0x1]
            %v645 = vmul.f32 %v644, 0.125
            %v646 = vld [vmem:[#allocation3] sm:$0x1]
            %v647 = vmul.f32 %v646, 0.125
            %v648 = vmul.f32 %v645, %v645
            %v649 = vsub.f32 %v647, %v648
            %v650 = vld [vmem:[%s2] sm:$0x1]
            %v651 = vadd.f32 %v649, 1e-05
            %v652 = vrsqrt.pop %v651
            %v653 = vmul.f32 %v650, %v652
            %654 = vst [vmem:[#allocation4] sm:$0x1] %v653
            %v655 = vld [vmem:[%s3] sm:$0x1]
            %v656 = vmul.f32 %v645, %v653
            %v657 = vsub.f32 %v655, %v656
            %658 = vst [vmem:[#allocation5] sm:$0x1] %v657
          $region72: #{tpu_custom_call.1} parent=67 // pred_fallthru
            _
          %v659 = vld [vmem:[#allocation4] sm:$0x1]
          %v661 = vlaneseq
          %v662 = vshrl.u32 %v661, 7
          %v663 = vsub.s32 0, %v662
          %v664 = vrot.slane %v659, %v663
          %v666 = vmul.f32 %v604, %v664
          %v667 = vld [vmem:[#allocation5] sm:$0x1]
          %v669 = vlaneseq
          %v670 = vshrl.u32 %v669, 7
          %v671 = vsub.s32 0, %v670
          %v672 = vrot.slane %v667, %v671
          %v674 = vadd.f32 %v666, %v672
          %v675 = vmax.f32 %v674, 0.0
          %v676 = vld [vmem:[#allocation11] sm:$0xff]
          %v677 = vld [vmem:[#allocation11 + $0x8] sm:$0xff]
          %v678 = vld [vmem:[#allocation11 + $0x10] sm:$0xff]
          %v679 = vld [vmem:[#allocation11 + $0x18] sm:$0xff]
          %v680 = vld [vmem:[#allocation11 + $0x20] sm:$0xff]
          %v681 = vld [vmem:[#allocation11 + $0x28] sm:$0xff]
          %v682 = vld [vmem:[#allocation11 + $0x30] sm:$0xff]
          %v683 = vld [vmem:[#allocation11 + $0x38] sm:$0xff]
          %v684 = vld [vmem:[#allocation11 + $0x40] sm:$0xff]
          %v685 = vld [vmem:[#allocation11 + $0x48] sm:$0xff]
          %v686 = vld [vmem:[#allocation11 + $0x50] sm:$0xff]
          %v687 = vld [vmem:[#allocation11 + $0x58] sm:$0xff]
          %v688 = vld [vmem:[#allocation11 + $0x60] sm:$0xff]
          %v689 = vld [vmem:[#allocation11 + $0x68] sm:$0xff]
          %v690 = vld [vmem:[#allocation11 + $0x70] sm:$0xff]
          %v691 = vld [vmem:[#allocation11 + $0x78] sm:$0xff]
          %v692 = vld [vmem:[%s5] sm:$0x1]
          %v694 = vlaneseq
          %v695 = vshrl.u32 %v694, 7
          %v696 = vsub.s32 0, %v695
          %v697 = vrot.slane %v692, %v696
          %699 = vmatprep.subr.mxu0 0.0
          %700 = vmatpush1.msra.mxu0 %v676
          %701 = vmatprep.subr.mxu0 0.0
          %702 = vmatpush1.msra.mxu0 %v677
          %703 = vmatprep.subr.mxu0 0.0
          %704 = vmatpush1.msra.mxu0 %v678
          %705 = vmatprep.subr.mxu0 0.0
          %706 = vmatpush1.msra.mxu0 %v679
          %707 = vmatprep.subr.mxu0 0.0
          %708 = vmatpush1.msra.mxu0 %v680
          %709 = vmatprep.subr.mxu0 0.0
          %710 = vmatpush1.msra.mxu0 %v681
          %711 = vmatprep.subr.mxu0 0.0
          %712 = vmatpush1.msra.mxu0 %v682
          %713 = vmatprep.subr.mxu0 0.0
          %714 = vmatpush1.msra.mxu0 %v683
          %715 = vmatprep.subr.mxu0 0.0
          %716 = vmatpush1.msra.mxu0 %v684
          %717 = vmatprep.subr.mxu0 0.0
          %718 = vmatpush1.msra.mxu0 %v685
          %719 = vmatprep.subr.mxu0 0.0
          %720 = vmatpush1.msra.mxu0 %v686
          %721 = vmatprep.subr.mxu0 0.0
          %722 = vmatpush1.msra.mxu0 %v687
          %723 = vmatprep.subr.mxu0 0.0
          %724 = vmatpush1.msra.mxu0 %v688
          %725 = vmatprep.subr.mxu0 0.0
          %726 = vmatpush1.msra.mxu0 %v689
          %727 = vmatprep.subr.mxu0 0.0
          %728 = vmatpush1.msra.mxu0 %v690
          %729 = vmatprep.subr.mxu0 0.0
          %730 = vmatpush1.msra.mxu0 %v691
          %731 = vmatprep.subr.mxu0 0.0
          %732 = vmatpush1.msra.mxu0 0.0
          %733 = vmatprep.subr.mxu0 0.0
          %734 = vmatpush1.msra.mxu0 0.0
          %735 = vmatprep.subr.mxu0 0.0
          %736 = vmatpush1.msra.mxu0 0.0
          %737 = vmatprep.subr.mxu0 0.0
          %738 = vmatpush1.msra.mxu0 0.0
          %739 = vmatprep.subr.mxu0 0.0
          %740 = vmatpush1.msra.mxu0 0.0
          %741 = vmatprep.subr.mxu0 0.0
          %742 = vmatpush1.msra.mxu0 0.0
          %743 = vmatprep.subr.mxu0 0.0
          %744 = vmatpush1.msra.mxu0 0.0
          %745 = vmatprep.subr.mxu0 0.0
          %746 = vmatpush1.msra.mxu0 0.0
          %747 = vmatprep.subr.mxu0 0.0
          %748 = vmatpush1.msra.mxu0 0.0
          %749 = vmatprep.subr.mxu0 0.0
          %750 = vmatpush1.msra.mxu0 0.0
          %751 = vmatprep.subr.mxu0 0.0
          %752 = vmatpush1.msra.mxu0 0.0
          %753 = vmatprep.subr.mxu0 0.0
          %754 = vmatpush1.msra.mxu0 0.0
          %755 = vmatprep.subr.mxu0 0.0
          %756 = vmatpush1.msra.mxu0 0.0
          %757 = vmatprep.subr.mxu0 0.0
          %758 = vmatpush1.msra.mxu0 0.0
          %759 = vmatprep.subr.mxu0 0.0
          %760 = vmatpush1.msra.mxu0 0.0
          %761 = vmatprep.subr.mxu0 0.0
          %762 = vmatpush1.msra.mxu0 0.0
          %763 = vmatprep.mubr.f32.mxu0 0.0
          %764 = vmatmul.mubr.f32.gmra.mrb[0].mxu0 %v675
          %v765 = vpop.f32.mrb[0].mxu0
          %v766 = vadd.f32 %v697, %v765
          %v767 = vpop.f32.mrb[0].mxu0
          %768 = vdwg.mxu0
          %769 = vst [vmem:[%s293] sm:$0xff] %v766
        $region68: #{tpu_custom_call.1} parent=43 // pred_fallthru
          _
        %s770 = sand.u32 %s175, 1
        %s771 = scalar_lea.sflag [#allocation8], %s770
        %s772 = sand.u32 %s175, 1
        %s773 = smul.addr %s772, 8
        %s774 = scalar_lea.vmem [#allocation12], %s773
        // Predicated region
        $region73: #{tpu_custom_call.1} parent=43 // pred_check
          %p775 = pneg %p185
        $region74: #{tpu_custom_call.1} parent=43 // pred_check_branch
          %777 = sbr.rel (%p775) target = $region76
        $region75: #{tpu_custom_call.1} parent=43 // pred_region
          %s778 = smul.u32 %s26, %s27
          %s780 = ssub.s32 128, 128
          %781 = vsyncadd %s771, %s780
          %s782 = smul.addr %s778, 128
          %s783 = scalar_lea.hbm %s6, %s782
          %s785 = sshll.u32 %s774, 4
          %s786 = int_to_ptr.vmem [resolvable:$true] %s785
          %788 = dma.vmem_to_hbm [thread:$0]  %s786, 128, %s783, %s771
        $region76: #{tpu_custom_call.1} parent=43 // pred_fallthru
          _
      $region44: #{tpu_custom_call.1} parent=5 // pred_fallthru
        _
      %p789 = scmp.le.s32.totalorder 2, %s17
      // Predicated region
      $region77: #{tpu_custom_call.1} parent=5 // pred_check
        %p790 = pneg %p789
      $region78: #{tpu_custom_call.1} parent=5 // pred_check_branch
        %792 = sbr.rel (%p790) target = $region80
      $region79: #{tpu_custom_call.1} parent=5 // pred_region
        %s793 = ssub.s32 %s17, 2
        // Predicated region
        $region81: #{tpu_custom_call.1} parent=79 // pred_check
          %p794 = pneg %p191
        $region82: #{tpu_custom_call.1} parent=79 // pred_check_branch
          %796 = sbr.rel (%p794) target = $region84
        $region83: #{tpu_custom_call.1} parent=79 // pred_region
          %s797 = sand.u32 %s176, 1
          %s798 = scalar_lea.sflag [#allocation8], %s797
          %s799 = sand.u32 %s176, 1
          %s800 = smul.addr %s799, 8
          %s801 = scalar_lea.vmem [#allocation12], %s800
          %802 = dma.done %s798, 128
        $region84: #{tpu_custom_call.1} parent=79 // pred_fallthru
          _
      $region80: #{tpu_custom_call.1} parent=5 // pred_fallthru
        _
    $region6: #{tpu_custom_call.1} parent=1 // loop_footer
      %s21 = sadd.s32 1, %s17
    $region7: #{tpu_custom_call.1} parent=1 // loop_footer_branch
      %16 = sbr.rel target = $region3
    $region8: #{tpu_custom_call.1} parent=1 // loop_exit
      _
    %803 = vsyncpa [#allocation7], 1
    %s804 = scalar_lea.sflag [#allocation7], 1
    %805 = vsyncpa %s804, 1
    %806 = vsyncpa [#allocation10], 1
    %807 = vsyncpa [#allocation8], 1
    %s808 = scalar_lea.sflag [#allocation8], 1
    %809 = vsyncpa %s808, 1

</llo_original>
